<compile_context>
chip_gen: v5e
topology: v5e:2x2
jax: 0.10.0
libtpu: 0.0.40
codegen_flags: <defaults>
</compile_context>

<pallas_src>
import functools

import jax
import jax.numpy as jnp
from jax.experimental import pallas as pl
from jax.experimental.pallas import tpu as pltpu


# ---------------------------------------------------------------------------
# Kernel: y = x @ w + b, (M, N, K)-tiled, K innermost, f32 output accumulator
# ---------------------------------------------------------------------------

def _matmul_bias_kernel(x_ref, w_ref, b_ref, o_ref):
    k = pl.program_id(2)

    @pl.when(k == 0)
    def _init():
        o_ref[...] = jnp.zeros_like(o_ref)

    # bf16 operands, exact f32 accumulation on the MXU.
    o_ref[...] += jnp.dot(
        x_ref[...], w_ref[...], preferred_element_type=jnp.float32)

    @pl.when(k == pl.num_programs(2) - 1)
    def _finalize():
        o_ref[...] += b_ref[...]          # bias added once, in the epilogue


# ---------------------------------------------------------------------------
# Tiling helpers
# ---------------------------------------------------------------------------

def _round_up(x, m):
    return (x + m - 1) // m * m


def _divisor_tile(dim, unit, cap):
    """Largest multiple of `unit` that divides `dim` and is <= cap.

    `dim` must be a multiple of `unit`.  Pure Python, runs at trace time.
    """
    n = dim // unit
    best = 1
    for d in range(1, n + 1):
        if n % d == 0 and d * unit <= cap:
            best = d
    return best * unit


def _choose_tiles(Mp, Kp, Np):
    tm = _divisor_tile(Mp, 16, 512)      # 16: bf16 sublane packing
    tk = _divisor_tile(Kp, 128, 1024)    # lane-dense, divides Kp exactly
    tn = _divisor_tile(Np, 128, 512)     # lane-dense, divides Np exactly
    # v7x megacore: the two TensorCores shard the "parallel" grid axes; make
    # sure there are >= 2 parallel iterations when N allows it.
    if (Mp // tm) * (Np // tn) == 1 and Np // 128 >= 2:
        tn = _divisor_tile(Np, 128, max(128, tn // 2))
    return tm, tk, tn


# ---------------------------------------------------------------------------
# Wrapper
# ---------------------------------------------------------------------------

@functools.partial(jax.jit, static_argnames=("training", "noise_stddev"))
def noisy_linear(x, w, b, *, noise_stddev=0.1, training=False, key=None):
    """Pallas forward pass matching NoisyLinear.forward."""
    M, K = x.shape
    Kw, N = w.shape
    assert K == Kw, "input_size mismatch"

    if training:
        if key is None:
            raise ValueError(
                "training=True requires an explicit PRNG `key`; refusing to "
                "default to a fixed seed (silently deterministic noise).")
        # Noise drawn once per call, added once to x (matches torch's single
        # x_new = x + noise), then reused by every output-column tile.
        noise = noise_stddev * jax.random.normal(key, x.shape, dtype=jnp.float32)
        x_new = x.astype(jnp.float32) + noise
    else:
        x_new = x.astype(jnp.float32)

    # bf16 MXU operands; bias stays f32 (added onto the f32 accumulator).
    x_bf = x_new.astype(jnp.bfloat16)
    w_bf = w.astype(jnp.bfloat16)
    b_f32 = b.astype(jnp.float32).reshape(1, N)

    # Minimal alignment padding only (tiles are exact divisors of these).
    Mp = _round_up(M, 16)
    Kp = _round_up(K, 128)
    Np = _round_up(N, 128)
    tm, tk, tn = _choose_tiles(Mp, Kp, Np)

    if (Mp, Kp) != (M, K):
        x_bf = jnp.pad(x_bf, ((0, Mp - M), (0, Kp - K)))
    if (Kp, Np) != (K, N):
        w_bf = jnp.pad(w_bf, ((0, Kp - K), (0, Np - N)))
    if Np != N:
        b_f32 = jnp.pad(b_f32, ((0, 0), (0, Np - N)))

    grid = (Mp // tm, Np // tn, Kp // tk)

    out = pl.pallas_call(
        _matmul_bias_kernel,
        out_shape=jax.ShapeDtypeStruct((Mp, Np), jnp.float32),
        grid=grid,
        in_specs=[
            pl.BlockSpec((tm, tk), lambda i, j, k: (i, k)),
            pl.BlockSpec((tk, tn), lambda i, j, k: (k, j)),
            pl.BlockSpec((1, tn), lambda i, j, k: (0, j)),
        ],
        out_specs=pl.BlockSpec((tm, tn), lambda i, j, k: (i, j)),
        compiler_params=pltpu.CompilerParams(
            dimension_semantics=("parallel", "parallel", "arbitrary"),
            # Plenty of room for the bf16 double-buffered blocks + f32 output
            # block; stays under v7x's 64 MiB physical VMEM.
            vmem_limit_bytes=48 * 1024 * 1024,
        ),
    )(x_bf, w_bf, b_f32)

    if (Mp, Np) != (M, N):
        out = out[:M, :N]
    return out


def init_params(key, input_size, output_size):
    """Parameter init matching the module's __init__.

    w: xavier_uniform_ on (input_size, output_size)
       -> U(-bound, bound), bound = sqrt(6 / (input_size + output_size))
    b: zeros of shape (output_size,)
    """
    bound = jnp.sqrt(6.0 / (input_size + output_size))
    w = jax.random.uniform(
        key, (input_size, output_size), dtype=jnp.float32,
        minval=-bound, maxval=bound)
    b = jnp.zeros((output_size,), dtype=jnp.float32)
    return w, b


# ---------------------------------------------------------------------------
# Demo / self-test
# ---------------------------------------------------------------------------

if __name__ == "__main__":
    noise_stddev = 0.1
    root = jax.random.PRNGKey(0)
    k_x, k_w, k_noise, k_x2, k_w2, k_noise2 = jax.random.split(root, 6)

    def bf16_ref(x_new, w, b):
        # Reference with the same bf16 operand rounding the kernel uses.
        xb = x_new.astype(jnp.bfloat16).astype(jnp.float32)
        wb = w.astype(jnp.bfloat16).astype(jnp.float32)
        return xb @ wb + b[None, :]

    # --- Small case matching the module's toy usage -------------------------
    batch, input_size, output_size = 8, 32, 64
    x = jax.random.normal(k_x, (batch, input_size), dtype=jnp.float32)
    w, b = init_params(k_w, input_size, output_size)

    y_eval = jax.block_until_ready(
        noisy_linear(x, w, b, noise_stddev=noise_stddev, training=False))
    assert y_eval.shape == (batch, output_size)
    assert jnp.allclose(y_eval, bf16_ref(x, w, b), atol=5e-2, rtol=5e-2), \
        "eval mismatch"

    y_train = jax.block_until_ready(
        noisy_linear(x, w, b, noise_stddev=noise_stddev, training=True,
                     key=k_noise))
    noise = noise_stddev * jax.random.normal(k_noise, x.shape, dtype=jnp.float32)
    assert y_train.shape == (batch, output_size)
    assert bool(jnp.all(jnp.isfinite(y_train)))
    assert jnp.allclose(y_train, bf16_ref(x + noise, w, b),
                        atol=5e-2, rtol=5e-2), "train mismatch"

    # --- Larger case exercising multi-tile grid + alignment padding ---------
    M2, K2, N2 = 24, 640, 300
    x2 = jax.random.normal(k_x2, (M2, K2), dtype=jnp.float32)
    w2, b2 = init_params(k_w2, K2, N2)

    y2 = jax.block_until_ready(
        noisy_linear(x2, w2, b2, noise_stddev=noise_stddev, training=False))
    assert y2.shape == (M2, N2)
    assert jnp.allclose(y2, bf16_ref(x2, w2, b2), atol=5e-2, rtol=5e-2), \
        "tiled eval mismatch"

    y2_train = jax.block_until_ready(
        noisy_linear(x2, w2, b2, noise_stddev=noise_stddev, training=True,
                     key=k_noise2))
    noise2 = noise_stddev * jax.random.normal(k_noise2, x2.shape,
                                              dtype=jnp.float32)
    assert y2_train.shape == (M2, N2)
    assert bool(jnp.all(jnp.isfinite(y2_train)))
    assert jnp.allclose(y2_train, bf16_ref(x2 + noise2, w2, b2),
                        atol=5e-2, rtol=5e-2), "tiled train mismatch"

    print("KERNEL_OK")
</pallas_src>

<mosaic_0001>
module attributes {stable_mosaic.version = 11 : i64} {
  func.func @_matmul_bias_kernel(%arg0: i32, %arg1: i32, %arg2: i32, %arg3: memref<16x128xbf16, #tpu.memory_space<vmem>>, %arg4: memref<128x128xbf16, #tpu.memory_space<vmem>>, %arg5: memref<1x128xf32, #tpu.memory_space<vmem>>, %arg6: memref<16x128xf32, #tpu.memory_space<vmem>>) attributes {dimension_semantics = [#tpu.dimension_semantics<parallel>, #tpu.dimension_semantics<parallel>, #tpu.dimension_semantics<arbitrary>], iteration_bounds = array<i64: 1, 1, 1>, scalar_prefetch = 0 : i64, scratch_operands = 0 : i64, tpu.core_type = #tpu.core_type<tc>, window_params = [{transform_indices = @transform_0, window_bounds = array<i64: 16, 128>}, {transform_indices = @transform_1, window_bounds = array<i64: 128, 128>}, {transform_indices = @transform_2, window_bounds = array<i64: 1, 128>}, {transform_indices = @transform_3, window_bounds = array<i64: 16, 128>}]} {
    %c0_i32 = arith.constant 0 : i32
    %0 = arith.cmpi eq, %arg2, %c0_i32 : i32
    %1 = arith.extui %0 : i1 to i32
    %c0_i32_0 = arith.constant 0 : i32
    %2 = arith.cmpi ne, %1, %c0_i32_0 : i32
    scf.if %2 {
      %cst_10 = arith.constant 0.000000e+00 : f32
      %12 = vector.broadcast %cst_10 : f32 to vector<16x128xf32>
      %c0_11 = arith.constant 0 : index
      %c0_12 = arith.constant 0 : index
      %13 = vector.load %arg6[%c0_11, %c0_12] : memref<16x128xf32, #tpu.memory_space<vmem>>, vector<16x128xf32>
      tpu.vector_store %arg6[%c0_11, %c0_12], %12 {strides = array<i32>} : memref<16x128xf32, #tpu.memory_space<vmem>>, vector<16x128xf32>,
    } else {
    }
    %c0 = arith.constant 0 : index
    %c0_1 = arith.constant 0 : index
    %3 = vector.load %arg6[%c0, %c0_1] : memref<16x128xf32, #tpu.memory_space<vmem>>, vector<16x128xf32>
    %c0_2 = arith.constant 0 : index
    %c0_3 = arith.constant 0 : index
    %4 = vector.load %arg3[%c0_2, %c0_3] : memref<16x128xbf16, #tpu.memory_space<vmem>>, vector<16x128xbf16>
    %c0_4 = arith.constant 0 : index
    %c0_5 = arith.constant 0 : index
    %5 = vector.load %arg4[%c0_4, %c0_5] : memref<128x128xbf16, #tpu.memory_space<vmem>>, vector<128x128xbf16>
    %cst = arith.constant dense<0.000000e+00> : vector<16x128xf32>
    %6 = tpu.matmul %4, %5, %cst {dimension_numbers = #tpu.dot_dimension_numbers<[1], [0], [0], [1], [0, 0, 1, 1], [], []>} : vector<16x128xbf16>, vector<128x128xbf16>, vector<16x128xf32> -> vector<16x128xf32>
    %7 = arith.addf %3, %6 : vector<16x128xf32>
    %c0_6 = arith.constant 0 : index
    %c0_7 = arith.constant 0 : index
    %8 = vector.load %arg6[%c0_6, %c0_7] : memref<16x128xf32, #tpu.memory_space<vmem>>, vector<16x128xf32>
    tpu.vector_store %arg6[%c0_6, %c0_7], %7 {strides = array<i32>} : memref<16x128xf32, #tpu.memory_space<vmem>>, vector<16x128xf32>,
    %c0_i32_8 = arith.constant 0 : i32
    %9 = arith.cmpi eq, %arg2, %c0_i32_8 : i32
    %10 = arith.extui %9 : i1 to i32
    %c0_i32_9 = arith.constant 0 : i32
    %11 = arith.cmpi ne, %10, %c0_i32_9 : i32
    scf.if %11 {
      %c0_10 = arith.constant 0 : index
      %c0_11 = arith.constant 0 : index
      %12 = vector.load %arg6[%c0_10, %c0_11] : memref<16x128xf32, #tpu.memory_space<vmem>>, vector<16x128xf32>
      %c0_12 = arith.constant 0 : index
      %c0_13 = arith.constant 0 : index
      %13 = vector.load %arg5[%c0_12, %c0_13] : memref<1x128xf32, #tpu.memory_space<vmem>>, vector<1x128xf32>
      %14 = vector.broadcast %13 : vector<1x128xf32> to vector<16x128xf32>
      %15 = arith.addf %12, %14 : vector<16x128xf32>
      %c0_14 = arith.constant 0 : index
      %c0_15 = arith.constant 0 : index
      %16 = vector.load %arg6[%c0_14, %c0_15] : memref<16x128xf32, #tpu.memory_space<vmem>>, vector<16x128xf32>
      tpu.vector_store %arg6[%c0_14, %c0_15], %15 {strides = array<i32>} : memref<16x128xf32, #tpu.memory_space<vmem>>, vector<16x128xf32>,
    } else {
    }
    return
  }
  func.func @transform_0(%arg0: i32, %arg1: i32, %arg2: i32) -> (i32, i32) {
    %c0_i32 = arith.constant 0 : i32
    return %arg0, %arg2 : i32, i32
  }
  func.func @transform_1(%arg0: i32, %arg1: i32, %arg2: i32) -> (i32, i32) {
    %c0_i32 = arith.constant 0 : i32
    return %arg2, %arg1 : i32, i32
  }
  func.func @transform_2(%arg0: i32, %arg1: i32, %arg2: i32) -> (i32, i32) {
    %c0_i32 = arith.constant 0 : i32
    %c0_i32_0 = arith.constant 0 : i32
    return %c0_i32, %arg1 : i32, i32
  }
  func.func @transform_3(%arg0: i32, %arg1: i32, %arg2: i32) -> (i32, i32) {
    %c0_i32 = arith.constant 0 : i32
    return %arg0, %arg1 : i32, i32
  }
}

</mosaic_0001>

<llo_original>
// kernel: noisy_linear.1
$region0: #{noisy_linear.1}
  #allocation0 [shape = 'u32[]', space=smem, size = 0x4, offset = 0x4, fixed_abs, tag = 'smem constant byte address 0x4 - core index']
  #allocation1 [shape = 'u32[72,128]{1,0:T(1,128)}', space=vmem, size = 0x9000, scoped, tag = 'internal scratch']
  %s0 = inlined_call_operand.vmem [shape: bf16[16,128], index: 0, kind: input, shape index: {}]
  %s1 = inlined_call_operand.vmem [shape: bf16[128,128], index: 1, kind: input, shape index: {}]
  %s2 = inlined_call_operand.vmem [shape: f32[1,128], index: 2, kind: input, shape index: {}]
  %s3 = inlined_call_operand.vmem [shape: f32[16,128], index: 3, kind: output, shape index: {}]
  %s4 = sld [smem:[#allocation0]]
  $region30: #{noisy_linear.1} parent=0
    _
  %s6 = ssub.s32 1, %s4
  %s7 = scalar_select 0, %s6, %s4
  // Predicated region
  $region2: #{noisy_linear.1} parent=0 // pred_check
    _
  $region3: #{noisy_linear.1} parent=0 // pred_check_branch
    %9 = sbr.rel (0) target = $region5
  $region4: #{noisy_linear.1} parent=0 // pred_region
    _
  $region5: #{noisy_linear.1} parent=0 // pred_fallthru
    _
  // Predicated region
  $region6: #{noisy_linear.1} parent=0 // pred_check
    _
  $region7: #{noisy_linear.1} parent=0 // pred_check_branch
    %11 = sbr.rel (0) target = $region9
  $region8: #{noisy_linear.1} parent=0 // pred_region
    _
  $region9: #{noisy_linear.1} parent=0 // pred_fallthru
    _
  // Predicated region
  $region10: #{noisy_linear.1} parent=0 // pred_check
    _
  $region11: #{noisy_linear.1} parent=0 // pred_check_branch
    %13 = sbr.rel (0) target = $region13
  $region12: #{noisy_linear.1} parent=0 // pred_region
    _
  $region13: #{noisy_linear.1} parent=0 // pred_fallthru
    _
  %p14 = scmp.eq.s32.totalorder 0, 0
  // Predicated region
  $region14: #{noisy_linear.1} parent=0 // pred_check
    %p15 = pneg %p14
  $region15: #{noisy_linear.1} parent=0 // pred_check_branch
    %17 = sbr.rel (%p15) target = $region17
  $region16: #{noisy_linear.1} parent=0 // pred_region
    %18 = vst [vmem:[%s3] sm:$0xff] 0.0
    %19 = vst [vmem:[%s3 + $0x8] sm:$0xff] 0.0
  $region17: #{noisy_linear.1} parent=0 // pred_fallthru
    _
  %v20 = vld [vmem:[%s3] sm:$0xff]
  %v21 = vld [vmem:[%s3 + $0x8] sm:$0xff]
  %v22 = vld [vmem:[%s0] sm:$0xf]
  %v23 = vld [vmem:[%s0 + $0x4] sm:$0xf]
  %v24 = vld [vmem:[%s1] sm:$0xf]
  %v25 = vld [vmem:[%s1 + $0x4] sm:$0xf]
  %v26 = vld [vmem:[%s1 + $0x8] sm:$0xf]
  %v27 = vld [vmem:[%s1 + $0xc] sm:$0xf]
  %v28 = vld [vmem:[%s1 + $0x10] sm:$0xf]
  %v29 = vld [vmem:[%s1 + $0x14] sm:$0xf]
  %v30 = vld [vmem:[%s1 + $0x18] sm:$0xf]
  %v31 = vld [vmem:[%s1 + $0x1c] sm:$0xf]
  %v32 = vld [vmem:[%s1 + $0x20] sm:$0xf]
  %v33 = vld [vmem:[%s1 + $0x24] sm:$0xf]
  %v34 = vld [vmem:[%s1 + $0x28] sm:$0xf]
  %v35 = vld [vmem:[%s1 + $0x2c] sm:$0xf]
  %v36 = vld [vmem:[%s1 + $0x30] sm:$0xf]
  %v37 = vld [vmem:[%s1 + $0x34] sm:$0xf]
  %v38 = vld [vmem:[%s1 + $0x38] sm:$0xf]
  %v39 = vld [vmem:[%s1 + $0x3c] sm:$0xf]
  %v42 = vunpack.c.l.b16 %v22
  %v43 = vunpack.c.l.b16 %v23
  %v44 = vpack.c.b16 %v43, %v42
  %v62 = vunpack.c.l.b16 %v24
  %v63 = vunpack.c.l.b16 %v25
  %v64 = vunpack.c.l.b16 %v26
  %v65 = vunpack.c.l.b16 %v27
  %v66 = vunpack.c.l.b16 %v28
  %v67 = vunpack.c.l.b16 %v29
  %v68 = vunpack.c.l.b16 %v30
  %v69 = vunpack.c.l.b16 %v31
  %v70 = vunpack.c.l.b16 %v32
  %v71 = vunpack.c.l.b16 %v33
  %v72 = vunpack.c.l.b16 %v34
  %v73 = vunpack.c.l.b16 %v35
  %v74 = vunpack.c.l.b16 %v36
  %v75 = vunpack.c.l.b16 %v37
  %v76 = vunpack.c.l.b16 %v38
  %v77 = vunpack.c.l.b16 %v39
  %v78 = vpack.c.b16 %v63, %v62
  %v79 = vpack.c.b16 %v65, %v64
  %v80 = vpack.c.b16 %v67, %v66
  %v81 = vpack.c.b16 %v69, %v68
  %v82 = vpack.c.b16 %v71, %v70
  %v83 = vpack.c.b16 %v73, %v72
  %v84 = vpack.c.b16 %v75, %v74
  %v85 = vpack.c.b16 %v77, %v76
  %94 = vmatpush.bf16.msra.mxu0 %v85
  %95 = vmatpush.bf16.msra.mxu0 %v84
  %96 = vmatpush.bf16.msra.mxu0 %v83
  %97 = vmatpush.bf16.msra.mxu0 %v82
  %98 = vmatpush.bf16.msra.mxu0 %v81
  %99 = vmatpush.bf16.msra.mxu0 %v80
  %100 = vmatpush.bf16.msra.mxu0 %v79
  %101 = vmatpush.bf16.msra.mxu0 %v78
  %102 = vmatmul.bf16.gmra.mxu0 %v44
  %v103 = vpop.f32.mrf.mxu0
  %v104 = vadd.f32 0.0, %v103
  %v105 = vpop.f32.mrf.mxu0
  %v106 = vadd.f32 0.0, %v105
  %107 = vdwg.mxu0
  %v108 = vadd.f32 %v20, %v104
  %v109 = vadd.f32 %v21, %v106
  %110 = vst [vmem:[%s3] sm:$0xff] %v108
  %111 = vst [vmem:[%s3 + $0x8] sm:$0xff] %v109
  // Predicated region
  $region18: #{noisy_linear.1} parent=0 // pred_check
    %p112 = pneg %p14
  $region19: #{noisy_linear.1} parent=0 // pred_check_branch
    %114 = sbr.rel (%p112) target = $region21
  $region20: #{noisy_linear.1} parent=0 // pred_region
    %v115 = vld [vmem:[%s3] sm:$0xff]
    %v116 = vld [vmem:[%s3 + $0x8] sm:$0xff]
    %v117 = vld [vmem:[%s2] sm:$0x1]
    %v119 = vperm.slane %v117, 0
    %v121 = vadd.f32 %v115, %v119
    %v122 = vadd.f32 %v116, %v119
    %123 = vst [vmem:[%s3] sm:$0xff] %v121
    %124 = vst [vmem:[%s3 + $0x8] sm:$0xff] %v122
  $region21: #{noisy_linear.1} parent=0 // pred_fallthru
    _
  // Predicated region
  $region22: #{noisy_linear.1} parent=0 // pred_check
    _
  $region23: #{noisy_linear.1} parent=0 // pred_check_branch
    %126 = sbr.rel (0) target = $region25
  $region24: #{noisy_linear.1} parent=0 // pred_region
    _
  $region25: #{noisy_linear.1} parent=0 // pred_fallthru
    _
  // Predicated region
  $region26: #{noisy_linear.1} parent=0 // pred_check
    _
  $region27: #{noisy_linear.1} parent=0 // pred_check_branch
    %128 = sbr.rel (0) target = $region29
  $region28: #{noisy_linear.1} parent=0 // pred_region
    _
  $region29: #{noisy_linear.1} parent=0 // pred_fallthru
    _

</llo_original>
